<compile_context>
chip_gen: v7x
topology: tpu7x:2x2x1
jax: 0.10.0
libtpu: 0.0.40
codegen_flags: <defaults>
</compile_context>

<pallas_src>
import jax
import jax.numpy as jnp
from jax import lax
from jax.experimental import pallas as pl
from jax.experimental.pallas import tpu as pltpu

LANES = 128
SUBLANES = 8
CHUNK = SUBLANES * LANES          # 1024 elements = one (8, 128) f32 vreg
MAX_TILE_ROWS = 8192              # (8192, 128) f32 block = 4 MiB per input
INNER_ROWS = 1024                 # in-kernel sub-chunk: bounds live temporaries
NUM_CORE_SPLITS = 2               # leading "parallel" axis (dual-TC chips, v7x)


def _make_kernel(rows, tile_r, inner_rows, num_inner, blocks_per_core, num_blocks):
    """Builds the kernel with all tiling parameters closed over as static ints."""
    last_blk = num_blocks - 1
    groups = inner_rows // SUBLANES

    def kernel(pred_ref, tgt_ref, sum_ref, cnt_ref):
        c = pl.program_id(0)                 # core-split index
        i = pl.program_id(1)                 # block index within this core's range
        blk = c * blocks_per_core + i        # logical block index (may be >= num_blocks)

        @pl.when(i == 0)
        def _():
            sum_ref[...] = jnp.zeros_like(sum_ref)
            cnt_ref[...] = jnp.zeros_like(cnt_ref)

        def process(j, masked):
            r0 = j * inner_rows              # static (Python int)
            t = tgt_ref[pl.ds(r0, inner_rows), :].astype(jnp.float32)
            p = pred_ref[pl.ds(r0, inner_rows), :].astype(jnp.float32)
            valid = t > 0.0
            if masked:
                # Only the final (possibly partial / fully out-of-range) block
                # pays for this row bound; the hot path never computes it.
                limit = rows - blk * tile_r - r0
                row_ids = lax.broadcasted_iota(jnp.int32, (inner_rows, LANES), 0)
                valid = jnp.logical_and(valid, row_ids < limit)
            contrib = jnp.where(valid, jnp.abs(t - p), 0.0)
            # Fold sublane groups into the vreg-shaped (8, 128) accumulators:
            # pure elementwise VPU adds, no cross-lane work in the loop.
            sum_ref[...] += contrib.reshape(groups, SUBLANES, LANES).sum(axis=0)
            cnt_ref[...] += valid.astype(jnp.int32).reshape(
                groups, SUBLANES, LANES).sum(axis=0)

        @pl.when(blk < last_blk)
        def _():
            # Full, in-bounds blocks: plain `target > 0` mask only.
            for j in range(num_inner):
                process(j, masked=False)

        @pl.when(blk >= last_blk)
        def _():
            # Last real block (possibly partial rows) or an out-of-range block
            # belonging to the other core's padding (fully masked).
            for j in range(num_inner):
                process(j, masked=True)

    return kernel


def masked_l1_loss(pred: jax.Array, target: jax.Array) -> jax.Array:
    assert pred.ndim == target.ndim, "inconsistent dimensions"
    assert pred.shape == target.shape, "inconsistent shapes"

    p_flat = pred.reshape(-1)
    t_flat = target.reshape(-1)
    n = p_flat.shape[0]

    rem = n % CHUNK                  # ragged tail handled in plain jnp (no pad copy)
    n_main = n - rem

    total_sum = jnp.float32(0.0)
    total_cnt = jnp.float32(0.0)

    if n_main > 0:
        rows = n_main // LANES       # multiple of SUBLANES by construction
        # No-op when n is already vreg-aligned (the common image-tensor case).
        p_main = p_flat if rem == 0 else lax.slice(p_flat, (0,), (n_main,))
        t_main = t_flat if rem == 0 else lax.slice(t_flat, (0,), (n_main,))
        p2 = p_main.reshape(rows, LANES)
        t2 = t_main.reshape(rows, LANES)

        if rows >= INNER_ROWS:
            tile_r = min(MAX_TILE_ROWS, (rows // INNER_ROWS) * INNER_ROWS)
            inner_rows = INNER_ROWS
        else:
            tile_r = rows
            inner_rows = rows
        num_inner = tile_r // inner_rows             # exact by construction
        num_blocks = pl.cdiv(rows, tile_r)
        blocks_per_core = pl.cdiv(num_blocks, NUM_CORE_SPLITS)
        grid = (NUM_CORE_SPLITS, blocks_per_core)

        # 2 inputs x 2 pipeline buffers x block bytes + headroom for in-kernel
        # temporaries / outputs.  >= 32 MiB lifts v5e's 16 MiB scoped default;
        # <= 48 MiB stays safely inside v7x's 64 MiB physical VMEM.
        block_bytes = tile_r * LANES * (p2.dtype.itemsize + t2.dtype.itemsize)
        vmem_limit = int(min(max(2 * block_bytes + (8 << 20), 32 << 20), 48 << 20))

        kernel = _make_kernel(rows, tile_r, inner_rows, num_inner,
                              blocks_per_core, num_blocks)

        def in_map(c, i):
            # Clamp so an out-of-range (fully masked) block never DMAs OOB HBM.
            return (jnp.minimum(c * blocks_per_core + i, num_blocks - 1), 0)

        sum_out, cnt_out = pl.pallas_call(
            kernel,
            out_shape=(
                jax.ShapeDtypeStruct((NUM_CORE_SPLITS, SUBLANES, LANES), jnp.float32),
                jax.ShapeDtypeStruct((NUM_CORE_SPLITS, SUBLANES, LANES), jnp.int32),
            ),
            grid=grid,
            in_specs=[
                pl.BlockSpec((tile_r, LANES), in_map),
                pl.BlockSpec((tile_r, LANES), in_map),
            ],
            out_specs=(
                pl.BlockSpec((None, SUBLANES, LANES), lambda c, i: (c, 0, 0)),
                pl.BlockSpec((None, SUBLANES, LANES), lambda c, i: (c, 0, 0)),
            ),
            compiler_params=pltpu.CompilerParams(
                dimension_semantics=("parallel", "arbitrary"),
                vmem_limit_bytes=vmem_limit,
            ),
        )(p2, t2)

        total_sum = total_sum + jnp.sum(sum_out)
        total_cnt = total_cnt + jnp.sum(cnt_out).astype(jnp.float32)

    if rem:
        # Sub-vreg tail (< 1024 elements): fold in with plain jnp instead of
        # padding (a pad would be a full read+write of both tensors in HBM).
        p_tail = lax.slice(p_flat, (n_main,), (n,)).astype(jnp.float32)
        t_tail = lax.slice(t_flat, (n_main,), (n,)).astype(jnp.float32)
        tv = t_tail > 0.0
        total_sum = total_sum + jnp.sum(jnp.where(tv, jnp.abs(t_tail - p_tail), 0.0))
        total_cnt = total_cnt + jnp.sum(tv.astype(jnp.float32))

    # 0 / 0 -> NaN matches torch's mean over an empty selection.
    return total_sum / total_cnt


def _reference(pred, target):
    valid = target > 0
    diff = jnp.where(valid, jnp.abs(target - pred), 0.0)
    return jnp.sum(diff) / jnp.sum(valid.astype(jnp.float32))


if __name__ == "__main__":
    key = jax.random.PRNGKey(0)
    kp, kt = jax.random.split(key)

    # Aligned case (NCHW image-like tensor): exercises the kernel path.
    B, C, H, W = 2, 4, 16, 16
    pred = jax.random.normal(kp, (B, C, H, W), dtype=jnp.float32)
    target = jax.random.normal(kt, (B, C, H, W), dtype=jnp.float32)

    loss = jax.block_until_ready(masked_l1_loss(pred, target))
    ref = _reference(pred, target)
    assert jnp.allclose(loss, ref, rtol=1e-5, atol=1e-6), (loss, ref)

    # Ragged case: kernel handles the aligned prefix, jnp folds the tail.
    pred_r = jax.random.normal(kp, (2, 4, 16, 17), dtype=jnp.float32)
    target_r = jax.random.normal(kt, (2, 4, 16, 17), dtype=jnp.float32)
    loss_r = jax.block_until_ready(masked_l1_loss(pred_r, target_r))
    ref_r = _reference(pred_r, target_r)
    assert jnp.allclose(loss_r, ref_r, rtol=1e-5, atol=1e-6), (loss_r, ref_r)

    print("KERNEL_OK")
</pallas_src>

<mosaic_0001>
module attributes {stable_mosaic.version = 11 : i64} {
  func.func @kernel(%arg0: i32, %arg1: i32, %arg2: memref<16x128xf32, #tpu.memory_space<vmem>>, %arg3: memref<16x128xf32, #tpu.memory_space<vmem>>, %arg4: memref<1x8x128xf32, #tpu.memory_space<vmem>>, %arg5: memref<1x8x128xi32, #tpu.memory_space<vmem>>) attributes {dimension_semantics = [#tpu.dimension_semantics<parallel>, #tpu.dimension_semantics<arbitrary>], iteration_bounds = array<i64: 2, 1>, scalar_prefetch = 0 : i64, scratch_operands = 0 : i64, tpu.core_type = #tpu.core_type<tc>, window_params = [{transform_indices = @transform_0, window_bounds = array<i64: 16, 128>}, {transform_indices = @transform_1, window_bounds = array<i64: 16, 128>}, {transform_indices = @transform_2, window_bounds = array<i64: 1, 8, 128>}, {transform_indices = @transform_3, window_bounds = array<i64: 1, 8, 128>}]} {
    %c1_i32 = arith.constant 1 : i32
    %0 = arith.muli %arg0, %c1_i32 : i32
    %1 = arith.addi %0, %arg1 : i32
    %c0_i32 = arith.constant 0 : i32
    %2 = arith.cmpi eq, %arg1, %c0_i32 : i32
    %3 = arith.extui %2 : i1 to i32
    %c0_i32_0 = arith.constant 0 : i32
    %4 = arith.cmpi ne, %3, %c0_i32_0 : i32
    scf.if %4 {
      %cst = arith.constant 0.000000e+00 : f32
      %11 = vector.broadcast %cst : f32 to vector<8x128xf32>
      %c0 = arith.constant 0 : index
      %c0_5 = arith.constant 0 : index
      %c0_6 = arith.constant 0 : index
      %12 = vector.load %arg4[%c0, %c0_5, %c0_6] : memref<1x8x128xf32, #tpu.memory_space<vmem>>, vector<1x8x128xf32>
      %13 = vector.shape_cast %12 : vector<1x8x128xf32> to vector<8x128xf32>
      %14 = vector.shape_cast %11 : vector<8x128xf32> to vector<1x8x128xf32>
      tpu.vector_store %arg4[%c0, %c0_5, %c0_6], %14 {strides = array<i32>} : memref<1x8x128xf32, #tpu.memory_space<vmem>>, vector<1x8x128xf32>,
      %c0_i32_7 = arith.constant 0 : i32
      %15 = vector.broadcast %c0_i32_7 : i32 to vector<8x128xi32>
      %c0_8 = arith.constant 0 : index
      %c0_9 = arith.constant 0 : index
      %c0_10 = arith.constant 0 : index
      %16 = vector.load %arg5[%c0_8, %c0_9, %c0_10] : memref<1x8x128xi32, #tpu.memory_space<vmem>>, vector<1x8x128xi32>
      %17 = vector.shape_cast %16 : vector<1x8x128xi32> to vector<8x128xi32>
      %18 = vector.shape_cast %15 : vector<8x128xi32> to vector<1x8x128xi32>
      tpu.vector_store %arg5[%c0_8, %c0_9, %c0_10], %18 {strides = array<i32>} : memref<1x8x128xi32, #tpu.memory_space<vmem>>, vector<1x8x128xi32>,
    } else {
    }
    %c0_i32_1 = arith.constant 0 : i32
    %5 = arith.cmpi slt, %1, %c0_i32_1 : i32
    %6 = arith.extui %5 : i1 to i32
    %c0_i32_2 = arith.constant 0 : i32
    %7 = arith.cmpi ne, %6, %c0_i32_2 : i32
    scf.if %7 {
      %c0 = arith.constant 0 : index
      %c0_5 = arith.constant 0 : index
      %11 = vector.load %arg3[%c0, %c0_5] : memref<16x128xf32, #tpu.memory_space<vmem>>, vector<16x128xf32>
      %c0_6 = arith.constant 0 : index
      %c0_7 = arith.constant 0 : index
      %12 = vector.load %arg2[%c0_6, %c0_7] : memref<16x128xf32, #tpu.memory_space<vmem>>, vector<16x128xf32>
      %cst = arith.constant 0.000000e+00 : f32
      %13 = vector.broadcast %cst : f32 to vector<16x128xf32>
      %14 = arith.cmpf ogt, %11, %13 : vector<16x128xf32>
      %15 = arith.subf %11, %12 : vector<16x128xf32>
      %16 = math.absf %15 : vector<16x128xf32>
      %cst_8 = arith.constant 0.000000e+00 : f32
      %17 = vector.broadcast %cst_8 : f32 to vector<16x128xf32>
      %18 = arith.select %14, %16, %17 : vector<16x128xi1>, vector<16x128xf32>
      %c0_9 = arith.constant 0 : index
      %c0_10 = arith.constant 0 : index
      %c0_11 = arith.constant 0 : index
      %19 = vector.load %arg4[%c0_9, %c0_10, %c0_11] : memref<1x8x128xf32, #tpu.memory_space<vmem>>, vector<1x8x128xf32>
      %20 = vector.shape_cast %19 : vector<1x8x128xf32> to vector<8x128xf32>
      %21 = vector.shape_cast %18 : vector<16x128xf32> to vector<2x8x128xf32>
      %cst_12 = arith.constant dense<0.000000e+00> : vector<8x128xf32>
      %22 = vector.multi_reduction <add>, %21, %cst_12 [0] : vector<2x8x128xf32> to vector<8x128xf32>
      %23 = arith.addf %20, %22 : vector<8x128xf32>
      %c0_13 = arith.constant 0 : index
      %c0_14 = arith.constant 0 : index
      %c0_15 = arith.constant 0 : index
      %24 = vector.load %arg4[%c0_13, %c0_14, %c0_15] : memref<1x8x128xf32, #tpu.memory_space<vmem>>, vector<1x8x128xf32>
      %25 = vector.shape_cast %24 : vector<1x8x128xf32> to vector<8x128xf32>
      %26 = vector.shape_cast %23 : vector<8x128xf32> to vector<1x8x128xf32>
      tpu.vector_store %arg4[%c0_13, %c0_14, %c0_15], %26 {strides = array<i32>} : memref<1x8x128xf32, #tpu.memory_space<vmem>>, vector<1x8x128xf32>,
      %c0_16 = arith.constant 0 : index
      %c0_17 = arith.constant 0 : index
      %c0_18 = arith.constant 0 : index
      %27 = vector.load %arg5[%c0_16, %c0_17, %c0_18] : memref<1x8x128xi32, #tpu.memory_space<vmem>>, vector<1x8x128xi32>
      %28 = vector.shape_cast %27 : vector<1x8x128xi32> to vector<8x128xi32>
      %29 = arith.extui %14 : vector<16x128xi1> to vector<16x128xi32>
      %30 = vector.shape_cast %29 : vector<16x128xi32> to vector<2x8x128xi32>
      %cst_19 = arith.constant dense<0> : vector<8x128xi32>
      %31 = vector.multi_reduction <add>, %30, %cst_19 [0] : vector<2x8x128xi32> to vector<8x128xi32>
      %32 = arith.addi %28, %31 : vector<8x128xi32>
      %c0_20 = arith.constant 0 : index
      %c0_21 = arith.constant 0 : index
      %c0_22 = arith.constant 0 : index
      %33 = vector.load %arg5[%c0_20, %c0_21, %c0_22] : memref<1x8x128xi32, #tpu.memory_space<vmem>>, vector<1x8x128xi32>
      %34 = vector.shape_cast %33 : vector<1x8x128xi32> to vector<8x128xi32>
      %35 = vector.shape_cast %32 : vector<8x128xi32> to vector<1x8x128xi32>
      tpu.vector_store %arg5[%c0_20, %c0_21, %c0_22], %35 {strides = array<i32>} : memref<1x8x128xi32, #tpu.memory_space<vmem>>, vector<1x8x128xi32>,
    } else {
    }
    %c0_i32_3 = arith.constant 0 : i32
    %8 = arith.cmpi sge, %1, %c0_i32_3 : i32
    %9 = arith.extui %8 : i1 to i32
    %c0_i32_4 = arith.constant 0 : i32
    %10 = arith.cmpi ne, %9, %c0_i32_4 : i32
    scf.if %10 {
      %c0 = arith.constant 0 : index
      %c0_5 = arith.constant 0 : index
      %11 = vector.load %arg3[%c0, %c0_5] : memref<16x128xf32, #tpu.memory_space<vmem>>, vector<16x128xf32>
      %c0_6 = arith.constant 0 : index
      %c0_7 = arith.constant 0 : index
      %12 = vector.load %arg2[%c0_6, %c0_7] : memref<16x128xf32, #tpu.memory_space<vmem>>, vector<16x128xf32>
      %cst = arith.constant 0.000000e+00 : f32
      %13 = vector.broadcast %cst : f32 to vector<16x128xf32>
      %14 = arith.cmpf ogt, %11, %13 : vector<16x128xf32>
      %c16_i32 = arith.constant 16 : i32
      %15 = arith.muli %1, %c16_i32 : i32
      %c16_i32_8 = arith.constant 16 : i32
      %16 = arith.subi %c16_i32_8, %15 : i32
      %c0_i32_9 = arith.constant 0 : i32
      %17 = arith.subi %16, %c0_i32_9 : i32
      %18 = tpu.iota {dimensions = array<i32: 0>} : vector<16x128xi32>
      %19 = vector.broadcast %17 : i32 to vector<16x128xi32>
      %20 = arith.cmpi slt, %18, %19 : vector<16x128xi32>
      %21 = arith.andi %14, %20 : vector<16x128xi1>
      %22 = arith.subf %11, %12 : vector<16x128xf32>
      %23 = math.absf %22 : vector<16x128xf32>
      %cst_10 = arith.constant 0.000000e+00 : f32
      %24 = vector.broadcast %cst_10 : f32 to vector<16x128xf32>
      %25 = arith.select %21, %23, %24 : vector<16x128xi1>, vector<16x128xf32>
      %c0_11 = arith.constant 0 : index
      %c0_12 = arith.constant 0 : index
      %c0_13 = arith.constant 0 : index
      %26 = vector.load %arg4[%c0_11, %c0_12, %c0_13] : memref<1x8x128xf32, #tpu.memory_space<vmem>>, vector<1x8x128xf32>
      %27 = vector.shape_cast %26 : vector<1x8x128xf32> to vector<8x128xf32>
      %28 = vector.shape_cast %25 : vector<16x128xf32> to vector<2x8x128xf32>
      %cst_14 = arith.constant dense<0.000000e+00> : vector<8x128xf32>
      %29 = vector.multi_reduction <add>, %28, %cst_14 [0] : vector<2x8x128xf32> to vector<8x128xf32>
      %30 = arith.addf %27, %29 : vector<8x128xf32>
      %c0_15 = arith.constant 0 : index
      %c0_16 = arith.constant 0 : index
      %c0_17 = arith.constant 0 : index
      %31 = vector.load %arg4[%c0_15, %c0_16, %c0_17] : memref<1x8x128xf32, #tpu.memory_space<vmem>>, vector<1x8x128xf32>
      %32 = vector.shape_cast %31 : vector<1x8x128xf32> to vector<8x128xf32>
      %33 = vector.shape_cast %30 : vector<8x128xf32> to vector<1x8x128xf32>
      tpu.vector_store %arg4[%c0_15, %c0_16, %c0_17], %33 {strides = array<i32>} : memref<1x8x128xf32, #tpu.memory_space<vmem>>, vector<1x8x128xf32>,
      %c0_18 = arith.constant 0 : index
      %c0_19 = arith.constant 0 : index
      %c0_20 = arith.constant 0 : index
      %34 = vector.load %arg5[%c0_18, %c0_19, %c0_20] : memref<1x8x128xi32, #tpu.memory_space<vmem>>, vector<1x8x128xi32>
      %35 = vector.shape_cast %34 : vector<1x8x128xi32> to vector<8x128xi32>
      %36 = arith.extui %21 : vector<16x128xi1> to vector<16x128xi32>
      %37 = vector.shape_cast %36 : vector<16x128xi32> to vector<2x8x128xi32>
      %cst_21 = arith.constant dense<0> : vector<8x128xi32>
      %38 = vector.multi_reduction <add>, %37, %cst_21 [0] : vector<2x8x128xi32> to vector<8x128xi32>
      %39 = arith.addi %35, %38 : vector<8x128xi32>
      %c0_22 = arith.constant 0 : index
      %c0_23 = arith.constant 0 : index
      %c0_24 = arith.constant 0 : index
      %40 = vector.load %arg5[%c0_22, %c0_23, %c0_24] : memref<1x8x128xi32, #tpu.memory_space<vmem>>, vector<1x8x128xi32>
      %41 = vector.shape_cast %40 : vector<1x8x128xi32> to vector<8x128xi32>
      %42 = vector.shape_cast %39 : vector<8x128xi32> to vector<1x8x128xi32>
      tpu.vector_store %arg5[%c0_22, %c0_23, %c0_24], %42 {strides = array<i32>} : memref<1x8x128xi32, #tpu.memory_space<vmem>>, vector<1x8x128xi32>,
    } else {
    }
    return
  }
  func.func @transform_0(%arg0: i32, %arg1: i32) -> (i32, i32) {
    %c1_i32 = arith.constant 1 : i32
    %0 = arith.muli %arg0, %c1_i32 : i32
    %1 = arith.addi %0, %arg1 : i32
    %c0_i32 = arith.constant 0 : i32
    %2 = arith.minsi %1, %c0_i32 : i32
    %c0_i32_0 = arith.constant 0 : i32
    %c0_i32_1 = arith.constant 0 : i32
    return %2, %c0_i32_0 : i32, i32
  }
  func.func @transform_1(%arg0: i32, %arg1: i32) -> (i32, i32) {
    %c1_i32 = arith.constant 1 : i32
    %0 = arith.muli %arg0, %c1_i32 : i32
    %1 = arith.addi %0, %arg1 : i32
    %c0_i32 = arith.constant 0 : i32
    %2 = arith.minsi %1, %c0_i32 : i32
    %c0_i32_0 = arith.constant 0 : i32
    %c0_i32_1 = arith.constant 0 : i32
    return %2, %c0_i32_0 : i32, i32
  }
  func.func @transform_2(%arg0: i32, %arg1: i32) -> (i32, i32, i32) {
    %c0_i32 = arith.constant 0 : i32
    %c0_i32_0 = arith.constant 0 : i32
    %c0_i32_1 = arith.constant 0 : i32
    return %arg0, %c0_i32, %c0_i32_0 : i32, i32, i32
  }
  func.func @transform_3(%arg0: i32, %arg1: i32) -> (i32, i32, i32) {
    %c0_i32 = arith.constant 0 : i32
    %c0_i32_0 = arith.constant 0 : i32
    %c0_i32_1 = arith.constant 0 : i32
    return %arg0, %c0_i32, %c0_i32_0 : i32, i32, i32
  }
}

</mosaic_0001>

<llo_original>
// kernel: tpu_custom_call.1
$region0: #{tpu_custom_call.1}
  #allocation0 [shape = 'u32[]', space=smem, size = 0x4, offset = 0x4, fixed_abs, tag = 'smem constant byte address 0x4 - core index']
  #allocation1 [shape = 'u32[144,128]{1,0:T(1,128)}', space=vmem, size = 0x12000, scoped, tag = 'internal scratch']
  %s0 = inlined_call_operand.hbm [shape: f32[16,128], index: 0, kind: input, shape index: {}]
  %s1 = inlined_call_operand.hbm [shape: f32[16,128], index: 1, kind: input, shape index: {}]
  %s2 = inlined_call_operand.hbm [shape: f32[2,8,128], index: 2, kind: output, shape index: {0}]
  %s3 = inlined_call_operand.hbm [shape: s32[2,8,128], index: 3, kind: output, shape index: {1}]
  %4 = xla_tuple %s2, %s3
  %s5 = sld [smem:[#allocation0]]
  $region69: #{tpu_custom_call.1} parent=0
    _
  %s7 = ssub.s32 1, %s5
  %s8 = scalar_select 0, %s7, %s5
  $region1: #{tpu_custom_call.1} parent=0
    #allocation2 [shape = 'u8[16384]{0}', space=vmem, size = 0x4000, scoped, tag = 'input window, operand 0']
    #allocation3 [shape = 's32[2]{0}', space=sflag, size = 0x8, scoped, tag = 'scoped memory for tpu_custom_call.1']
    #allocation4 [shape = 's32[2]{0}', space=sflag, size = 0x8, scoped, tag = 'scoped memory for tpu_custom_call.1']
    #allocation5 [shape = 'u8[16384]{0}', space=vmem, size = 0x4000, scoped, tag = 'input window, operand 1']
    #allocation6 [shape = 's32[2]{0}', space=sflag, size = 0x8, scoped, tag = 'scoped memory for tpu_custom_call.1']
    #allocation7 [shape = 'u8[8192]{0}', space=vmem, size = 0x2000, scoped, tag = 'output window, operand 0']
    #allocation8 [shape = 'u8[8192]{0}', space=vmem, size = 0x2000, scoped, tag = 'output window, operand 1']
    #allocation9 [shape = 's32[2]{0}', space=sflag, size = 0x8, scoped, tag = 'scoped memory for tpu_custom_call.1']
    %9 = vsyncpa [#allocation3], 0
    %s10 = scalar_lea.sflag [#allocation3], 1
    %11 = vsyncpa %s10, 0
    %12 = vsyncpa [#allocation6], 0
    %s13 = scalar_lea.sflag [#allocation6], 1
    %14 = vsyncpa %s13, 0
    %15 = vsyncpa [#allocation4], 0
    %s16 = scalar_lea.sflag [#allocation4], 1
    %17 = vsyncpa %s16, 0
    %18 = vsyncpa [#allocation9], 0
    %s19 = scalar_lea.sflag [#allocation9], 1
    %20 = vsyncpa %s19, 0
    loop: start=0, step=1, limit=4
    $region2: #{tpu_custom_call.1} parent=1 // loop_pre_header
      _
    $region3: #{tpu_custom_call.1} parent=1 // loop_header
      %s22 = sphi 0, %s26
      %p23 = scmp.ge.s32.totalorder %s22, 4
      %s29 = sphi 0, %s41
      %s30 = sphi 0, %s37
      %s31 = sphi 0, %s29
      %s32 = sphi 0, %s30
      %s33 = sphi 0, %s31
      %s34 = sphi 0, %s32
      %s50 = sphi 0, %s52
      %s53 = sphi 0, %s50
      %s54 = sphi 0, %s53
      %s70 = sphi 0, %s54
      %s82 = sphi 0, %s84
      %s85 = sphi 0, %s82
      %s86 = sphi 0, %s85
      %s102 = sphi 0, %s86
      %s108 = sphi 0, %s110
      %s111 = sphi 0, %s108
      %s112 = sphi 0, %s111
      %s128 = sphi 0, %s112
      %s134 = sphi 0, %s136
      %s137 = sphi 0, %s134
      %s138 = sphi 0, %s137
      %s154 = sphi 0, %s138
    $region4: #{tpu_custom_call.1} parent=1 // loop_header_branch
      %25 = sbr.rel (%p23) target = $region8
    $region5: #{tpu_custom_call.1} parent=1 // loop_body
      %s27 = ssub.s32 %s22, 1
      %s28 = ssub.s32 %s22, 2
      %s35 = sadd.s32 1, %s30
      %p36 = scmp.ge.s32.totalorder %s35, 1
      %s37 = scalar_select %p36, 0, %s35
      %s38 = sadd.s32 1, %s29
      %s39 = scalar_select %p36, %s38, %s29
      %p40 = scmp.ge.s32.totalorder %s39, 2
      %s41 = scalar_select %p40, 0, %s39
      %s42 = sadd.s32 %s29, %s30
      %p43 = scmp.lt.s32.totalorder %s42, 0
      %s44 = scalar_select %p43, %s42, 0
      %s45 = sadd.s32 %s41, %s37
      %p46 = scmp.lt.s32.totalorder %s45, 0
      %s47 = scalar_select %p46, %s45, 0
      %s48 = ssub.s32 %s44, %s47
      %p49 = scmp.eq.s32.totalorder %s48, 0
      %s51 = sadd.s32 %s50, 1
      %s52 = scalar_select %p49, %s50, %s51
      %p55 = pneg %p49
      %p56 = scmp.eq.s32.totalorder %s22, 1
      %p57 = por %p55, %p56
      %p58 = scmp.ne.s32.totalorder %s50, %s53
      %p59 = scmp.eq.s32.totalorder %s22, 0
      %p60 = por %p58, %p59
      %p61 = scmp.ne.s32.totalorder %s50, %s53
      %p62 = scmp.eq.s32.totalorder %s27, 1
      %p63 = por %p61, %p62
      %p64 = scmp.ne.s32.totalorder %s53, %s54
      %p65 = scmp.eq.s32.totalorder %s27, 0
      %p66 = por %p64, %p65
      %p67 = scmp.ne.s32.totalorder %s53, %s54
      %p68 = scmp.eq.s32.totalorder %s28, 1
      %p69 = por %p67, %p68
      %p71 = scmp.ne.s32.totalorder %s54, %s70
      %p72 = scmp.eq.s32.totalorder %s28, 0
      %p73 = por %p71, %p72
      %s74 = sadd.s32 %s29, %s30
      %p75 = scmp.lt.s32.totalorder %s74, 0
      %s76 = scalar_select %p75, %s74, 0
      %s77 = sadd.s32 %s41, %s37
      %p78 = scmp.lt.s32.totalorder %s77, 0
      %s79 = scalar_select %p78, %s77, 0
      %s80 = ssub.s32 %s76, %s79
      %p81 = scmp.eq.s32.totalorder %s80, 0
      %s83 = sadd.s32 %s82, 1
      %s84 = scalar_select %p81, %s82, %s83
      %p87 = pneg %p81
      %p88 = scmp.eq.s32.totalorder %s22, 1
      %p89 = por %p87, %p88
      %p90 = scmp.ne.s32.totalorder %s82, %s85
      %p91 = scmp.eq.s32.totalorder %s22, 0
      %p92 = por %p90, %p91
      %p93 = scmp.ne.s32.totalorder %s82, %s85
      %p94 = scmp.eq.s32.totalorder %s27, 1
      %p95 = por %p93, %p94
      %p96 = scmp.ne.s32.totalorder %s85, %s86
      %p97 = scmp.eq.s32.totalorder %s27, 0
      %p98 = por %p96, %p97
      %p99 = scmp.ne.s32.totalorder %s85, %s86
      %p100 = scmp.eq.s32.totalorder %s28, 1
      %p101 = por %p99, %p100
      %p103 = scmp.ne.s32.totalorder %s86, %s102
      %p104 = scmp.eq.s32.totalorder %s28, 0
      %p105 = por %p103, %p104
      %s106 = ssub.s32 %s29, %s41
      %p107 = scmp.eq.s32.totalorder %s106, 0
      %s109 = sadd.s32 %s108, 1
      %s110 = scalar_select %p107, %s108, %s109
      %p113 = pneg %p107
      %p114 = scmp.eq.s32.totalorder %s22, 1
      %p115 = por %p113, %p114
      %p116 = scmp.ne.s32.totalorder %s108, %s111
      %p117 = scmp.eq.s32.totalorder %s22, 0
      %p118 = por %p116, %p117
      %p119 = scmp.ne.s32.totalorder %s108, %s111
      %p120 = scmp.eq.s32.totalorder %s27, 1
      %p121 = por %p119, %p120
      %p122 = scmp.ne.s32.totalorder %s111, %s112
      %p123 = scmp.eq.s32.totalorder %s27, 0
      %p124 = por %p122, %p123
      %p125 = scmp.ne.s32.totalorder %s111, %s112
      %p126 = scmp.eq.s32.totalorder %s28, 1
      %p127 = por %p125, %p126
      %p129 = scmp.ne.s32.totalorder %s112, %s128
      %p130 = scmp.eq.s32.totalorder %s28, 0
      %p131 = por %p129, %p130
      %s132 = ssub.s32 %s29, %s41
      %p133 = scmp.eq.s32.totalorder %s132, 0
      %s135 = sadd.s32 %s134, 1
      %s136 = scalar_select %p133, %s134, %s135
      %p139 = pneg %p133
      %p140 = scmp.eq.s32.totalorder %s22, 1
      %p141 = por %p139, %p140
      %p142 = scmp.ne.s32.totalorder %s134, %s137
      %p143 = scmp.eq.s32.totalorder %s22, 0
      %p144 = por %p142, %p143
      %p145 = scmp.ne.s32.totalorder %s134, %s137
      %p146 = scmp.eq.s32.totalorder %s27, 1
      %p147 = por %p145, %p146
      %p148 = scmp.ne.s32.totalorder %s137, %s138
      %p149 = scmp.eq.s32.totalorder %s27, 0
      %p150 = por %p148, %p149
      %p151 = scmp.ne.s32.totalorder %s137, %s138
      %p152 = scmp.eq.s32.totalorder %s28, 1
      %p153 = por %p151, %p152
      %p155 = scmp.ne.s32.totalorder %s138, %s154
      %p156 = scmp.eq.s32.totalorder %s28, 0
      %p157 = por %p155, %p156
      %p158 = scmp.le.s32.totalorder 1, %s22
      %p159 = scmp.lt.s32.totalorder %s22, 3
      %p160 = pnand %p158, %p159
      %p161 = pneg %p160
      // Predicated region
      $region9: #{tpu_custom_call.1} parent=5 // pred_check
        _
      $region10: #{tpu_custom_call.1} parent=5 // pred_check_branch
        %163 = sbr.rel (%p160) target = $region12
      $region11: #{tpu_custom_call.1} parent=5 // pred_region
        %s164 = ssub.s32 %s22, 1
      $region12: #{tpu_custom_call.1} parent=5 // pred_fallthru
        _
      %p165 = scmp.lt.s32.totalorder %s22, 2
      // Predicated region
      $region13: #{tpu_custom_call.1} parent=5 // pred_check
        %p166 = pneg %p165
      $region14: #{tpu_custom_call.1} parent=5 // pred_check_branch
        %168 = sbr.rel (%p166) target = $region16
      $region15: #{tpu_custom_call.1} parent=5 // pred_region
        // Predicated region
        $region17: #{tpu_custom_call.1} parent=15 // pred_check
          %p169 = pneg %p60
        $region18: #{tpu_custom_call.1} parent=15 // pred_check_branch
          %171 = sbr.rel (%p169) target = $region20
        $region19: #{tpu_custom_call.1} parent=15 // pred_region
          %s172 = sand.u32 %s50, 1
          %s173 = scalar_lea.sflag [#allocation3], %s172
          %s174 = sand.u32 %s50, 1
          %s175 = smul.addr %s174, 16
          %s176 = scalar_lea.vmem [#allocation2], %s175
          %s177 = sadd.s32 %s29, %s30
          %p178 = scmp.lt.s32.totalorder %s177, 0
          %s179 = scalar_select %p178, %s177, 0
          %s180 = smul.u32 2, %s179
          %s182 = ssub.s32 256, 256
          %183 = vsyncadd %s173, %s182
          %s184 = smul.addr %s180, 128
          %s185 = scalar_lea.hbm %s0, %s184
          %s186 = sshll.u32 %s176, 4
          %s187 = int_to_ptr.vmem [resolvable:$true] %s186
          %192 = dma.hbm_to_vmem [thread:$0]  %s185, 256, %s187, %s173, 128, 128, 8
        $region20: #{tpu_custom_call.1} parent=15 // pred_fallthru
          _
        // Predicated region
        $region21: #{tpu_custom_call.1} parent=15 // pred_check
          %p193 = pneg %p92
        $region22: #{tpu_custom_call.1} parent=15 // pred_check_branch
          %195 = sbr.rel (%p193) target = $region24
        $region23: #{tpu_custom_call.1} parent=15 // pred_region
          %s196 = sand.u32 %s82, 1
          %s197 = scalar_lea.sflag [#allocation6], %s196
          %s198 = sand.u32 %s82, 1
          %s199 = smul.addr %s198, 16
          %s200 = scalar_lea.vmem [#allocation5], %s199
          %s201 = sadd.s32 %s29, %s30
          %p202 = scmp.lt.s32.totalorder %s201, 0
          %s203 = scalar_select %p202, %s201, 0
          %s204 = smul.u32 2, %s203
          %s206 = ssub.s32 256, 256
          %207 = vsyncadd %s197, %s206
          %s208 = smul.addr %s204, 128
          %s209 = scalar_lea.hbm %s1, %s208
          %s210 = sshll.u32 %s200, 4
          %s211 = int_to_ptr.vmem [resolvable:$true] %s210
          %216 = dma.hbm_to_vmem [thread:$0]  %s209, 256, %s211, %s197, 128, 128, 8
        $region24: #{tpu_custom_call.1} parent=15 // pred_fallthru
          _
      $region16: #{tpu_custom_call.1} parent=5 // pred_fallthru
        _
      %p217 = scmp.le.s32.totalorder 1, %s22
      %p218 = scmp.lt.s32.totalorder %s22, 3
      %p219 = pnand %p217, %p218
      %p220 = pneg %p219
      // Predicated region
      $region25: #{tpu_custom_call.1} parent=5 // pred_check
        _
      $region26: #{tpu_custom_call.1} parent=5 // pred_check_branch
        %222 = sbr.rel (%p219) target = $region28
      $region27: #{tpu_custom_call.1} parent=5 // pred_region
        %s223 = ssub.s32 %s22, 1
        %s224 = sand.u32 %s53, 1
        %s225 = scalar_lea.sflag [#allocation3], %s224
        %s226 = sand.u32 %s53, 1
        %s227 = smul.addr %s226, 16
        %s228 = scalar_lea.vmem [#allocation2], %s227
        // Predicated region
        $region29: #{tpu_custom_call.1} parent=27 // pred_check
          %p229 = pneg %p66
        $region30: #{tpu_custom_call.1} parent=27 // pred_check_branch
          %231 = sbr.rel (%p229) target = $region32
        $region31: #{tpu_custom_call.1} parent=27 // pred_region
          %232 = dma.done %s225, 256
        $region32: #{tpu_custom_call.1} parent=27 // pred_fallthru
          _
        %s233 = sand.u32 %s85, 1
        %s234 = scalar_lea.sflag [#allocation6], %s233
        %s235 = sand.u32 %s85, 1
        %s236 = smul.addr %s235, 16
        %s237 = scalar_lea.vmem [#allocation5], %s236
        // Predicated region
        $region33: #{tpu_custom_call.1} parent=27 // pred_check
          %p238 = pneg %p98
        $region34: #{tpu_custom_call.1} parent=27 // pred_check_branch
          %240 = sbr.rel (%p238) target = $region36
        $region35: #{tpu_custom_call.1} parent=27 // pred_region
          %241 = dma.done %s234, 256
        $region36: #{tpu_custom_call.1} parent=27 // pred_fallthru
          _
        %s242 = sand.u32 %s53, 1
        %s243 = scalar_lea.sflag [#allocation3], %s242
        %s244 = sand.u32 %s53, 1
        %s245 = smul.addr %s244, 16
        %s246 = scalar_lea.vmem [#allocation2], %s245
        %p247 = pneg %p66
        %p248 = pneg %p63
        %s249 = sand.u32 %s85, 1
        %s250 = scalar_lea.sflag [#allocation6], %s249
        %s251 = sand.u32 %s85, 1
        %s252 = smul.addr %s251, 16
        %s253 = scalar_lea.vmem [#allocation5], %s252
        %p254 = pneg %p98
        %p255 = pneg %p95
        %p256 = pneg %p124
        %p257 = pneg %p121
        %s258 = sand.u32 %s111, 1
        %s259 = scalar_lea.sflag [#allocation4], %s258
        %s260 = sand.u32 %s111, 1
        %s261 = smul.addr %s260, 8
        %s262 = scalar_lea.vmem [#allocation7], %s261
        %p263 = pneg %p150
        %p264 = pneg %p147
        %s265 = sand.u32 %s137, 1
        %s266 = scalar_lea.sflag [#allocation9], %s265
        %s267 = sand.u32 %s137, 1
        %s268 = smul.addr %s267, 8
        %s269 = scalar_lea.vmem [#allocation8], %s268
        %s270 = sadd.s32 %s31, %s32
        %p271 = scmp.lt.s32.totalorder %s270, 0
        %s272 = scalar_select %p271, %s270, 0
        %s273 = smul.u32 2, %s272
        %s274 = sadd.s32 %s31, %s32
        %p275 = scmp.lt.s32.totalorder %s274, 0
        %s276 = scalar_select %p275, %s274, 0
        %s277 = smul.u32 2, %s276
        %s278 = sadd.s32 %s31, %s32
        %p279 = scmp.eq.s32.totalorder %s32, 0
        // Predicated region
        $region37: #{tpu_custom_call.1} parent=27 // pred_check
          %p280 = pneg %p279
        $region38: #{tpu_custom_call.1} parent=27 // pred_check_branch
          %282 = sbr.rel (%p280) target = $region40
        $region39: #{tpu_custom_call.1} parent=27 // pred_region
          %283 = vst [vmem:[%s262] sm:$0xff] 0.0
          %284 = vst [vmem:[%s269] sm:$0xff] 0
        $region40: #{tpu_custom_call.1} parent=27 // pred_fallthru
          _
        %p285 = scmp.lt.s32.totalorder %s278, 0
        // Predicated region
        $region41: #{tpu_custom_call.1} parent=27 // pred_check
          %p286 = pneg %p285
        $region42: #{tpu_custom_call.1} parent=27 // pred_check_branch
          %288 = sbr.rel (%p286) target = $region44
        $region43: #{tpu_custom_call.1} parent=27 // pred_region
          %v289 = vld [vmem:[%s237] sm:$0xff]
          %v290 = vld [vmem:[%s237 + $0x8] sm:$0xff]
          %v291 = vld [vmem:[%s228] sm:$0xff]
          %v292 = vld [vmem:[%s228 + $0x8] sm:$0xff]
          %vm293 = vcmp.gt.f32.partialorder %v289, 0.0
          %vm294 = vcmp.gt.f32.partialorder %v290, 0.0
          %v295 = vsub.f32 %v289, %v291
          %v296 = vsub.f32 %v290, %v292
          %v297 = vand.u32 2147483647, %v295
          %v298 = vand.u32 2147483647, %v296
          %v299 = vsel %vm293, %v297, 0.0
          %v300 = vsel %vm294, %v298, 0.0
          %v301 = vld [vmem:[%s262] sm:$0xff]
          %v302 = vadd.f32 %v299, %v300
          %v303 = vadd.f32 %v301, %v302
          %304 = vst [vmem:[%s262] sm:$0xff] %v303
          %v305 = vld [vmem:[%s269] sm:$0xff]
          %v306 = vsel %vm293, 1, 0
          %v307 = vsel %vm294, 1, 0
          %v308 = vadd.s32 %v306, %v307
          %v309 = vadd.s32 %v305, %v308
          %310 = vst [vmem:[%s269] sm:$0xff] %v309
        $region44: #{tpu_custom_call.1} parent=27 // pred_fallthru
          _
        %p311 = scmp.ge.s32.totalorder %s278, 0
        // Predicated region
        $region45: #{tpu_custom_call.1} parent=27 // pred_check
          %p312 = pneg %p311
        $region46: #{tpu_custom_call.1} parent=27 // pred_check_branch
          %314 = sbr.rel (%p312) target = $region48
        $region47: #{tpu_custom_call.1} parent=27 // pred_region
          %v315 = vld [vmem:[%s237] sm:$0xff]
          %v316 = vld [vmem:[%s237 + $0x8] sm:$0xff]
          %v317 = vld [vmem:[%s228] sm:$0xff]
          %v318 = vld [vmem:[%s228 + $0x8] sm:$0xff]
          %vm319 = vcmp.gt.f32.partialorder %v315, 0.0
          %vm320 = vcmp.gt.f32.partialorder %v316, 0.0
          %s321 = smul.u32 %s278, 16
          %s322 = ssub.s32 16, %s321
          %v323 = vlaneseq
          %v324 = vshrl.u32 %v323, 7
          %v325 = vadd.s32 %v324, 8
          %v326 = vstv %s322
          %vm327 = vcmp.lt.s32.totalorder %v324, %v326
          %vm328 = vcmp.lt.s32.totalorder %v325, %v326
          %vm329 = vmand %vm319, %vm327
          %vm330 = vmand %vm320, %vm328
          %v331 = vsub.f32 %v315, %v317
          %v332 = vsub.f32 %v316, %v318
          %v333 = vand.u32 2147483647, %v331
          %v334 = vand.u32 2147483647, %v332
          %v335 = vsel %vm329, %v333, 0.0
          %v336 = vsel %vm330, %v334, 0.0
          %v337 = vld [vmem:[%s262] sm:$0xff]
          %v338 = vadd.f32 %v335, %v336
          %v339 = vadd.f32 %v337, %v338
          %340 = vst [vmem:[%s262] sm:$0xff] %v339
          %v341 = vld [vmem:[%s269] sm:$0xff]
          %v342 = vsel %vm329, 1, 0
          %v343 = vsel %vm330, 1, 0
          %v344 = vadd.s32 %v342, %v343
          %v345 = vadd.s32 %v341, %v344
          %346 = vst [vmem:[%s269] sm:$0xff] %v345
        $region48: #{tpu_custom_call.1} parent=27 // pred_fallthru
          _
        %s347 = sand.u32 %s111, 1
        %s348 = scalar_lea.sflag [#allocation4], %s347
        %s349 = sand.u32 %s111, 1
        %s350 = smul.addr %s349, 8
        %s351 = scalar_lea.vmem [#allocation7], %s350
        %s352 = sand.u32 %s137, 1
        %s353 = scalar_lea.sflag [#allocation9], %s352
        %s354 = sand.u32 %s137, 1
        %s355 = smul.addr %s354, 8
        %s356 = scalar_lea.vmem [#allocation8], %s355
        // Predicated region
        $region49: #{tpu_custom_call.1} parent=27 // pred_check
          %p357 = pneg %p121
        $region50: #{tpu_custom_call.1} parent=27 // pred_check_branch
          %359 = sbr.rel (%p357) target = $region52
        $region51: #{tpu_custom_call.1} parent=27 // pred_region
          %s361 = ssub.s32 128, 128
          %362 = vsyncadd %s348, %s361
          %s363 = smul.addr %s31, 128
          %s364 = scalar_lea.hbm %s2, %s363
          %s366 = sshll.u32 %s351, 4
          %s367 = int_to_ptr.vmem [resolvable:$true] %s366
          %369 = dma.vmem_to_hbm [thread:$0]  %s367, 128, %s364, %s348
        $region52: #{tpu_custom_call.1} parent=27 // pred_fallthru
          _
        // Predicated region
        $region53: #{tpu_custom_call.1} parent=27 // pred_check
          %p370 = pneg %p147
        $region54: #{tpu_custom_call.1} parent=27 // pred_check_branch
          %372 = sbr.rel (%p370) target = $region56
        $region55: #{tpu_custom_call.1} parent=27 // pred_region
          %s374 = ssub.s32 128, 128
          %375 = vsyncadd %s353, %s374
          %s376 = smul.addr %s31, 128
          %s377 = scalar_lea.hbm %s3, %s376
          %s379 = sshll.u32 %s356, 4
          %s380 = int_to_ptr.vmem [resolvable:$true] %s379
          %382 = dma.vmem_to_hbm [thread:$0]  %s380, 128, %s377, %s353
        $region56: #{tpu_custom_call.1} parent=27 // pred_fallthru
          _
      $region28: #{tpu_custom_call.1} parent=5 // pred_fallthru
        _
      %p383 = scmp.le.s32.totalorder 2, %s22
      // Predicated region
      $region57: #{tpu_custom_call.1} parent=5 // pred_check
        %p384 = pneg %p383
      $region58: #{tpu_custom_call.1} parent=5 // pred_check_branch
        %386 = sbr.rel (%p384) target = $region60
      $region59: #{tpu_custom_call.1} parent=5 // pred_region
        %s387 = ssub.s32 %s22, 2
        // Predicated region
        $region61: #{tpu_custom_call.1} parent=59 // pred_check
          %p388 = pneg %p127
        $region62: #{tpu_custom_call.1} parent=59 // pred_check_branch
          %390 = sbr.rel (%p388) target = $region64
        $region63: #{tpu_custom_call.1} parent=59 // pred_region
          %s391 = sand.u32 %s112, 1
          %s392 = scalar_lea.sflag [#allocation4], %s391
          %s393 = sand.u32 %s112, 1
          %s394 = smul.addr %s393, 8
          %s395 = scalar_lea.vmem [#allocation7], %s394
          %396 = dma.done %s392, 128
        $region64: #{tpu_custom_call.1} parent=59 // pred_fallthru
          _
        // Predicated region
        $region65: #{tpu_custom_call.1} parent=59 // pred_check
          %p397 = pneg %p153
        $region66: #{tpu_custom_call.1} parent=59 // pred_check_branch
          %399 = sbr.rel (%p397) target = $region68
        $region67: #{tpu_custom_call.1} parent=59 // pred_region
          %s400 = sand.u32 %s138, 1
          %s401 = scalar_lea.sflag [#allocation9], %s400
          %s402 = sand.u32 %s138, 1
          %s403 = smul.addr %s402, 8
          %s404 = scalar_lea.vmem [#allocation8], %s403
          %405 = dma.done %s401, 128
        $region68: #{tpu_custom_call.1} parent=59 // pred_fallthru
          _
      $region60: #{tpu_custom_call.1} parent=5 // pred_fallthru
        _
    $region6: #{tpu_custom_call.1} parent=1 // loop_footer
      %s26 = sadd.s32 1, %s22
    $region7: #{tpu_custom_call.1} parent=1 // loop_footer_branch
      %21 = sbr.rel target = $region3
    $region8: #{tpu_custom_call.1} parent=1 // loop_exit
      _
    %406 = vsyncpa [#allocation3], 1
    %s407 = scalar_lea.sflag [#allocation3], 1
    %408 = vsyncpa %s407, 1
    %409 = vsyncpa [#allocation6], 1
    %s410 = scalar_lea.sflag [#allocation6], 1
    %411 = vsyncpa %s410, 1
    %412 = vsyncpa [#allocation4], 1
    %s413 = scalar_lea.sflag [#allocation4], 1
    %414 = vsyncpa %s413, 1
    %415 = vsyncpa [#allocation9], 1
    %s416 = scalar_lea.sflag [#allocation9], 1
    %417 = vsyncpa %s416, 1

</llo_original>
